<compile_context>
chip_gen: v7x
topology: tpu7x:2x2x1
jax: 0.10.0
libtpu: 0.0.40
codegen_flags: <defaults>
</compile_context>

<pallas_src>
import functools
import math

import jax
import jax.numpy as jnp
from jax.experimental import pallas as pl
from jax.experimental.pallas import tpu as pltpu

_NEG_BIG = -1e30                    # finite "-inf": no NaN on fully-masked rows
_VMEM_LIMIT = 32 * 1024 * 1024      # safe on v5e/v6e (128 MiB) and v7x (64 MiB)


def _pick_tile(dim, cap):
    """Tile size that satisfies the Pallas tiling rule (divides or == full)."""
    if dim <= cap or dim % cap != 0:
        return dim
    return cap


# ---------------------------------------------------------------------------
# Tiled matmul kernel (bf16 MXU inputs, f32 accumulation)
# ---------------------------------------------------------------------------
def _matmul_kernel(x_ref, w_ref, o_ref, acc_ref):
    @pl.when(pl.program_id(2) == 0)
    def _():
        acc_ref[...] = jnp.zeros(acc_ref.shape, acc_ref.dtype)

    acc_ref[...] += jnp.dot(x_ref[...], w_ref[...],
                            preferred_element_type=jnp.float32)

    @pl.when(pl.program_id(2) == pl.num_programs(2) - 1)
    def _():
        o_ref[...] = acc_ref[...].astype(o_ref.dtype)


def pallas_matmul(x, w, out_dtype=jnp.float32, *,
                  tm_cap=256, tn_cap=256, tk_cap=512):
    """y = x @ w (bias-free nn.Linear)."""
    M, K = x.shape
    K2, N = w.shape
    assert K == K2
    x = x.astype(jnp.bfloat16)
    w = w.astype(jnp.bfloat16)
    tm, tn, tk = _pick_tile(M, tm_cap), _pick_tile(N, tn_cap), _pick_tile(K, tk_cap)
    return pl.pallas_call(
        _matmul_kernel,
        out_shape=jax.ShapeDtypeStruct((M, N), out_dtype),
        grid=(M // tm, N // tn, K // tk),
        in_specs=[
            pl.BlockSpec((tm, tk), lambda i, j, k: (i, k)),
            pl.BlockSpec((tk, tn), lambda i, j, k: (k, j)),
        ],
        out_specs=pl.BlockSpec((tm, tn), lambda i, j, k: (i, j)),
        scratch_shapes=[pltpu.VMEM((tm, tn), jnp.float32)],
        compiler_params=pltpu.CompilerParams(
            dimension_semantics=("parallel", "parallel", "arbitrary"),
            vmem_limit_bytes=_VMEM_LIMIT),
    )(x, w)


# ---------------------------------------------------------------------------
# Flash-style attention kernel: all heads per step, online softmax over Tk
# ---------------------------------------------------------------------------
def _flash_attn_kernel(q_ref, k_ref, v_ref, bias_ref, o_ref,
                       m_ref, l_ref, acc_ref, *, heads, dh):
    ki = pl.program_id(2)

    @pl.when(ki == 0)
    def _():
        m_ref[...] = jnp.full(m_ref.shape, _NEG_BIG, m_ref.dtype)
        l_ref[...] = jnp.zeros(l_ref.shape, l_ref.dtype)
        acc_ref[...] = jnp.zeros(acc_ref.shape, acc_ref.dtype)

    q = q_ref[0]      # (tq, H*dh) bf16, already pre-scaled by 1/scale
    k = k_ref[0]      # (tk, H*dh) bf16
    v = v_ref[0]      # (tk, H*dh) bf16

    for h in range(heads):                      # static unroll; heads = lane slices
        sl = slice(h * dh, (h + 1) * dh)
        s = jax.lax.dot_general(                # (tq, tk) content logits on MXU
            q[:, sl], k[:, sl],
            dimension_numbers=(((1,), (1,)), ((), ())),
            preferred_element_type=jnp.float32)
        s = s + bias_ref[0, h]                  # rel-pos + padding mask (already /scale)

        m_prev = m_ref[:, h:h + 1]
        m_new = jnp.maximum(m_prev, jnp.max(s, axis=-1, keepdims=True))
        alpha = jnp.exp(m_prev - m_new)
        p = jnp.exp(s - m_new)
        # TODO(synk): attention_dropout is identity here (inference semantics).
        l_ref[:, h:h + 1] = alpha * l_ref[:, h:h + 1] + jnp.sum(p, axis=-1, keepdims=True)
        acc_ref[:, sl] = alpha * acc_ref[:, sl] + jnp.dot(
            p.astype(v.dtype), v[:, sl], preferred_element_type=jnp.float32)
        m_ref[:, h:h + 1] = m_new

    @pl.when(ki == pl.num_programs(2) - 1)
    def _():
        for h in range(heads):
            sl = slice(h * dh, (h + 1) * dh)
            acc_ref[:, sl] = acc_ref[:, sl] * pl.reciprocal(
                l_ref[:, h:h + 1], approx=True)
        o_ref[0] = acc_ref[...].astype(o_ref.dtype)   # one lane-dense (tq, H*dh) store


def flash_attention(q, k, v, bias, *, heads, out_dtype=jnp.bfloat16,
                    tq_cap=128, tk_cap=128):
    """q,k,v: (B, T, H*Dh) bf16; bias: (B, H, Tq, Tk) f32 additive (pos + mask)."""
    B, Tq, D = q.shape
    Tk = k.shape[1]
    dh = D // heads
    tq, tk = _pick_tile(Tq, tq_cap), _pick_tile(Tk, tk_cap)
    kern = functools.partial(_flash_attn_kernel, heads=heads, dh=dh)
    return pl.pallas_call(
        kern,
        out_shape=jax.ShapeDtypeStruct((B, Tq, D), out_dtype),
        grid=(B, Tq // tq, Tk // tk),
        in_specs=[
            pl.BlockSpec((1, tq, D), lambda b, qi, ki: (b, qi, 0)),          # Q
            pl.BlockSpec((1, tk, D), lambda b, qi, ki: (b, ki, 0)),          # K
            pl.BlockSpec((1, tk, D), lambda b, qi, ki: (b, ki, 0)),          # V
            pl.BlockSpec((1, heads, tq, tk), lambda b, qi, ki: (b, 0, qi, ki)),  # bias
        ],
        out_specs=pl.BlockSpec((1, tq, D), lambda b, qi, ki: (b, qi, 0)),
        scratch_shapes=[
            pltpu.VMEM((tq, heads), jnp.float32),   # running max per head
            pltpu.VMEM((tq, heads), jnp.float32),   # running denom per head
            pltpu.VMEM((tq, D), jnp.float32),       # output accumulator
        ],
        compiler_params=pltpu.CompilerParams(
            dimension_semantics=("parallel", "parallel", "arbitrary"),
            vmem_limit_bytes=_VMEM_LIMIT),
    )(q, k, v, bias)


# ---------------------------------------------------------------------------
# Module wrapper
# ---------------------------------------------------------------------------
class AttentionSublayerPallas:
    def __init__(self, dimension, heads, max_pos_len, attention_dropout, key):
        assert dimension % heads == 0
        self.dimension = dimension
        self.heads = heads
        self.max_pos_len = max_pos_len
        self.scale = math.sqrt(dimension / heads)

        k1, k2, k3, k4, k5 = jax.random.split(key, 5)
        dh = dimension // heads
        # pos_embedding: (2*max_pos_len + 1, D // H), like torch.randn
        self.pos_embedding = jax.random.normal(
            k1, (2 * max_pos_len + 1, dh), dtype=jnp.float32)
        # nn.Linear weights are (out, in); deterministic small init.
        s = 0.05
        self.Wq = s * jax.random.normal(k2, (dimension, dimension), jnp.float32)
        self.Wk = s * jax.random.normal(k3, (dimension, dimension), jnp.float32)
        self.Wv = s * jax.random.normal(k4, (dimension, dimension), jnp.float32)
        self.Wo = s * jax.random.normal(k5, (dimension, dimension), jnp.float32)

    def _rel_pos_index(self, len_k, len_q):
        # idx[q, k] = clamp(k - q, -L, L) + L  (mirrors arrange_char_pos_embedding)
        L = self.max_pos_len
        return jnp.clip(jnp.arange(len_k)[None, :] - jnp.arange(len_q)[:, None],
                        -L, L) + L

    def __call__(self, x_q, x_k, x_v, mask):
        """x_*: (B, T, D) float32; mask: (B, 1, 1, T) bool (True == masked)."""
        B, Tq, D = x_q.shape
        Tk = x_k.shape[1]
        H, Dh = self.heads, D // self.heads
        bf16 = jnp.bfloat16

        # Fold 1/scale into the Q projection (scales both content and pos logits).
        Wq_t = self.Wq.T * (1.0 / self.scale)
        Wk_t, Wv_t = self.Wk.T, self.Wv.T

        xq2 = x_q.reshape(B * Tq, D)
        xk2 = x_k.reshape(B * Tk, D)
        xv2 = x_v.reshape(B * Tk, D)

        # Projections (bf16 MXU / f32 accumulation). Fuse weights when inputs alias
        # (self-attention) so the activation is read from HBM only once.
        if (x_q is x_k) and (x_k is x_v):
            qkv = pallas_matmul(xq2, jnp.concatenate([Wq_t, Wk_t, Wv_t], axis=1), bf16)
            Q2, K2, V2 = qkv[:, :D], qkv[:, D:2 * D], qkv[:, 2 * D:]
        elif x_k is x_v:
            Q2 = pallas_matmul(xq2, Wq_t, bf16)
            kv = pallas_matmul(xk2, jnp.concatenate([Wk_t, Wv_t], axis=1), bf16)
            K2, V2 = kv[:, :D], kv[:, D:]
        else:
            Q2 = pallas_matmul(xq2, Wq_t, bf16)
            K2 = pallas_matmul(xk2, Wk_t, bf16)
            V2 = pallas_matmul(xv2, Wv_t, bf16)

        # Keep (B, T, H*Dh) layout everywhere -> no HBM transposes.
        Q = Q2.reshape(B, Tq, D)
        K = K2.reshape(B, Tk, D)
        V = V2.reshape(B, Tk, D)

        # Relative-position logits from the small (2L+1, Dh) table:
        # pos_scores = Q_scaled @ E^T (tiny MXU einsum), band-gathered to (Tq, Tk),
        # then combined with the padding mask into one additive f32 bias.
        idx = self._rel_pos_index(Tk, Tq)                                 # (Tq, Tk)
        pos_scores = jnp.einsum(
            "bqhd,rd->bhqr",
            Q.reshape(B, Tq, H, Dh).astype(jnp.float32),
            self.pos_embedding)                                           # (B,H,Tq,2L+1)
        bias = jnp.take_along_axis(
            pos_scores,
            jnp.broadcast_to(idx[None, None], (B, H, Tq, Tk)), axis=-1)   # (B,H,Tq,Tk)
        if mask is not None:
            bias = bias + jnp.where(mask.reshape(B, 1, 1, Tk), _NEG_BIG, 0.0)
        bias = bias.astype(jnp.float32)

        # TODO(synk): only the sentence_lengths=None (char rel-pos) path is implemented.
        ctx = flash_attention(Q, K, V, bias, heads=H, out_dtype=bf16)     # (B,Tq,D)
        out = pallas_matmul(ctx.reshape(B * Tq, D), self.Wo.T, jnp.float32)
        return out.reshape(B, Tq, D)


# ---------------------------------------------------------------------------
# Pure-JAX f32 reference (mirrors the PyTorch forward) for a correctness check
# ---------------------------------------------------------------------------
def reference_forward(m: AttentionSublayerPallas, x_q, x_k, x_v, mask):
    B, Tq, D = x_q.shape
    Tk = x_k.shape[1]
    H, Dh = m.heads, D // m.heads

    def split(x, W, T):
        return (x @ W.T).reshape(B, T, H, Dh).transpose(0, 2, 1, 3)

    Q = split(x_q, m.Wq, Tq)
    K = split(x_k, m.Wk, Tk)
    V = split(x_v, m.Wv, Tk)
    logits = jnp.einsum("bhqd,bhkd->bhqk", Q, K)
    pos = m.pos_embedding[m._rel_pos_index(Tk, Tq)]          # (Tq, Tk, Dh)
    pos_logits = jnp.einsum("bhqd,qkd->bhqk", Q, pos)
    logits = (logits + pos_logits) / m.scale
    if mask is not None:
        logits = jnp.where(mask.reshape(B, 1, 1, Tk), -jnp.inf, logits)
    p = jax.nn.softmax(logits, axis=-1)
    ctx = jnp.einsum("bhqk,bhkd->bhqd", p, V)
    hc = ctx.transpose(0, 2, 1, 3).reshape(B, Tq, D)
    return hc @ m.Wo.T


# ---------------------------------------------------------------------------
if __name__ == "__main__":
    B, T, D, H, L = 2, 8, 32, 4, 4  # batch, seq, dim, heads, max_pos_len

    key = jax.random.PRNGKey(0)
    k_mod, k_q, k_k, k_v = jax.random.split(key, 4)

    module = AttentionSublayerPallas(
        dimension=D, heads=H, max_pos_len=L, attention_dropout=0.0, key=k_mod
    )

    x_q = jax.random.normal(k_q, (B, T, D), dtype=jnp.float32)
    x_k = jax.random.normal(k_k, (B, T, D), dtype=jnp.float32)
    x_v = jax.random.normal(k_v, (B, T, D), dtype=jnp.float32)

    # Padding mask (True == masked), shaped like PyTorch's (B, 1, 1, T)
    lengths = jnp.array([T, 5])
    mask = (jnp.arange(T)[None, :] >= lengths[:, None]).reshape(B, 1, 1, T)

    out = module(x_q, x_k, x_v, mask)
    out = jax.block_until_ready(out)

    ref = reference_forward(module, x_q, x_k, x_v, mask)
    assert out.shape == (B, T, D)
    assert jnp.all(jnp.isfinite(out))
    assert jnp.allclose(out, ref, atol=3e-2, rtol=3e-2), (
        f"max abs diff {jnp.max(jnp.abs(out - ref))}"
    )

    print("KERNEL_OK")
</pallas_src>

<mosaic_0001>
module attributes {stable_mosaic.version = 11 : i64} {
  func.func @_matmul_kernel(%arg0: i32, %arg1: i32, %arg2: i32, %arg3: memref<16x32xbf16, #tpu.memory_space<vmem>>, %arg4: memref<32x32xbf16, #tpu.memory_space<vmem>>, %arg5: memref<16x32xbf16, #tpu.memory_space<vmem>>, %arg6: memref<16x32xf32, #tpu.memory_space<vmem>>) attributes {dimension_semantics = [#tpu.dimension_semantics<parallel>, #tpu.dimension_semantics<parallel>, #tpu.dimension_semantics<arbitrary>], iteration_bounds = array<i64: 1, 1, 1>, scalar_prefetch = 0 : i64, scratch_operands = 1 : i64, tpu.core_type = #tpu.core_type<tc>, window_params = [{transform_indices = @transform_0, window_bounds = array<i64: 16, 32>}, {transform_indices = @transform_1, window_bounds = array<i64: 32, 32>}, {transform_indices = @transform_2, window_bounds = array<i64: 16, 32>}]} {
    %c0_i32 = arith.constant 0 : i32
    %0 = arith.cmpi eq, %arg2, %c0_i32 : i32
    %1 = arith.extui %0 : i1 to i32
    %c0_i32_0 = arith.constant 0 : i32
    %2 = arith.cmpi ne, %1, %c0_i32_0 : i32
    scf.if %2 {
      %cst_10 = arith.constant 0.000000e+00 : f32
      %12 = vector.broadcast %cst_10 : f32 to vector<16x32xf32>
      %c0_11 = arith.constant 0 : index
      %c0_12 = arith.constant 0 : index
      %13 = vector.load %arg6[%c0_11, %c0_12] : memref<16x32xf32, #tpu.memory_space<vmem>>, vector<16x32xf32>
      tpu.vector_store %arg6[%c0_11, %c0_12], %12 {strides = array<i32>} : memref<16x32xf32, #tpu.memory_space<vmem>>, vector<16x32xf32>,
    } else {
    }
    %c0 = arith.constant 0 : index
    %c0_1 = arith.constant 0 : index
    %3 = vector.load %arg6[%c0, %c0_1] : memref<16x32xf32, #tpu.memory_space<vmem>>, vector<16x32xf32>
    %c0_2 = arith.constant 0 : index
    %c0_3 = arith.constant 0 : index
    %4 = vector.load %arg3[%c0_2, %c0_3] : memref<16x32xbf16, #tpu.memory_space<vmem>>, vector<16x32xbf16>
    %c0_4 = arith.constant 0 : index
    %c0_5 = arith.constant 0 : index
    %5 = vector.load %arg4[%c0_4, %c0_5] : memref<32x32xbf16, #tpu.memory_space<vmem>>, vector<32x32xbf16>
    %cst = arith.constant dense<0.000000e+00> : vector<16x32xf32>
    %6 = tpu.matmul %4, %5, %cst {dimension_numbers = #tpu.dot_dimension_numbers<[1], [0], [0], [1], [0, 0, 1, 1], [], []>} : vector<16x32xbf16>, vector<32x32xbf16>, vector<16x32xf32> -> vector<16x32xf32>
    %7 = arith.addf %3, %6 : vector<16x32xf32>
    %c0_6 = arith.constant 0 : index
    %c0_7 = arith.constant 0 : index
    %8 = vector.load %arg6[%c0_6, %c0_7] : memref<16x32xf32, #tpu.memory_space<vmem>>, vector<16x32xf32>
    tpu.vector_store %arg6[%c0_6, %c0_7], %7 {strides = array<i32>} : memref<16x32xf32, #tpu.memory_space<vmem>>, vector<16x32xf32>,
    %c0_i32_8 = arith.constant 0 : i32
    %9 = arith.cmpi eq, %arg2, %c0_i32_8 : i32
    %10 = arith.extui %9 : i1 to i32
    %c0_i32_9 = arith.constant 0 : i32
    %11 = arith.cmpi ne, %10, %c0_i32_9 : i32
    scf.if %11 {
      %c0_10 = arith.constant 0 : index
      %c0_11 = arith.constant 0 : index
      %12 = vector.load %arg6[%c0_10, %c0_11] : memref<16x32xf32, #tpu.memory_space<vmem>>, vector<16x32xf32>
      %13 = arith.truncf %12 : vector<16x32xf32> to vector<16x32xbf16>
      %c0_12 = arith.constant 0 : index
      %c0_13 = arith.constant 0 : index
      %14 = vector.load %arg5[%c0_12, %c0_13] : memref<16x32xbf16, #tpu.memory_space<vmem>>, vector<16x32xbf16>
      tpu.vector_store %arg5[%c0_12, %c0_13], %13 {strides = array<i32>} : memref<16x32xbf16, #tpu.memory_space<vmem>>, vector<16x32xbf16>,
    } else {
    }
    return
  }
  func.func @transform_0(%arg0: i32, %arg1: i32, %arg2: i32) -> (i32, i32) {
    %c0_i32 = arith.constant 0 : i32
    return %arg0, %arg2 : i32, i32
  }
  func.func @transform_1(%arg0: i32, %arg1: i32, %arg2: i32) -> (i32, i32) {
    %c0_i32 = arith.constant 0 : i32
    return %arg2, %arg1 : i32, i32
  }
  func.func @transform_2(%arg0: i32, %arg1: i32, %arg2: i32) -> (i32, i32) {
    %c0_i32 = arith.constant 0 : i32
    return %arg0, %arg1 : i32, i32
  }
}

</mosaic_0001>

<llo_original>
// kernel: tpu_custom_call.1
$region0: #{tpu_custom_call.1}
  #allocation0 [shape = 'u32[]', space=smem, size = 0x4, offset = 0x4, fixed_abs, tag = 'smem constant byte address 0x4 - core index']
  #allocation1 [shape = 'u32[144,128]{1,0:T(1,128)}', space=vmem, size = 0x12000, scoped, tag = 'internal scratch']
  #allocation2 [shape = 'f32[16,32]{1,0:T(8,128)}', space=vmem, size = 0x2000, scoped, tag = 'scratch operand']
  %s0 = inlined_call_operand.hbm [shape: bf16[16,32], index: 0, kind: input, shape index: {}]
  %s1 = inlined_call_operand.hbm [shape: bf16[32,32], index: 1, kind: input, shape index: {}]
  %s2 = inlined_call_operand.hbm [shape: bf16[16,32], index: 2, kind: output, shape index: {}]
  %s3 = sld [smem:[#allocation0]]
  $region34: #{tpu_custom_call.1} parent=0
    _
  %s5 = ssub.s32 1, %s3
  %s6 = scalar_select 0, %s5, %s3
  $region1: #{tpu_custom_call.1} parent=0
    #allocation3 [shape = 'u8[4096]{0}', space=vmem, size = 0x1000, scoped, tag = 'input window, operand 0, single buffered']
    #allocation4 [shape = 's32[1]{0}', space=sflag, size = 0x4, scoped, tag = 'scoped memory for tpu_custom_call.1']
    #allocation5 [shape = 's32[1]{0}', space=sflag, size = 0x4, scoped, tag = 'scoped memory for tpu_custom_call.1']
    #allocation6 [shape = 'u8[8192]{0}', space=vmem, size = 0x2000, scoped, tag = 'input window, operand 1, single buffered']
    #allocation7 [shape = 's32[1]{0}', space=sflag, size = 0x4, scoped, tag = 'scoped memory for tpu_custom_call.1']
    #allocation8 [shape = 'u8[4096]{0}', space=vmem, size = 0x1000, scoped, tag = 'output window, operand 0, single buffered']
    %7 = vsyncpa [#allocation4], 0
    %8 = vsyncpa [#allocation7], 0
    %9 = vsyncpa [#allocation5], 0
    // Predicated region
    $region2: #{tpu_custom_call.1} parent=1 // pred_check
      _
    $region3: #{tpu_custom_call.1} parent=1 // pred_check_branch
      %11 = sbr.rel (0) target = $region5
    $region4: #{tpu_custom_call.1} parent=1 // pred_region
      %s13 = ssub.s32 128, 128
      %14 = vsyncadd [#allocation4], %s13
      %s15 = sshll.u32 [#allocation3], 4
      %s16 = int_to_ptr.vmem [resolvable:$true] %s15
      %21 = dma.hbm_to_vmem [thread:$0]  %s0, 128, %s16, [#allocation4], 64, 64, 4
    $region5: #{tpu_custom_call.1} parent=1 // pred_fallthru
      _
    // Predicated region
    $region6: #{tpu_custom_call.1} parent=1 // pred_check
      _
    $region7: #{tpu_custom_call.1} parent=1 // pred_check_branch
      %23 = sbr.rel (0) target = $region9
    $region8: #{tpu_custom_call.1} parent=1 // pred_region
      %s25 = ssub.s32 256, 256
      %26 = vsyncadd [#allocation7], %s25
      %s27 = sshll.u32 [#allocation6], 4
      %s28 = int_to_ptr.vmem [resolvable:$true] %s27
      %33 = dma.hbm_to_vmem [thread:$0]  %s1, 256, %s28, [#allocation7], 64, 64, 4
    $region9: #{tpu_custom_call.1} parent=1 // pred_fallthru
      _
    // Predicated region
    $region10: #{tpu_custom_call.1} parent=1 // pred_check
      _
    $region11: #{tpu_custom_call.1} parent=1 // pred_check_branch
      %35 = sbr.rel (0) target = $region13
    $region12: #{tpu_custom_call.1} parent=1 // pred_region
      %36 = dma.done [#allocation4], 128
    $region13: #{tpu_custom_call.1} parent=1 // pred_fallthru
      _
    // Predicated region
    $region14: #{tpu_custom_call.1} parent=1 // pred_check
      _
    $region15: #{tpu_custom_call.1} parent=1 // pred_check_branch
      %38 = sbr.rel (0) target = $region17
    $region16: #{tpu_custom_call.1} parent=1 // pred_region
      %39 = dma.done [#allocation7], 256
    $region17: #{tpu_custom_call.1} parent=1 // pred_fallthru
      _
    %p41 = scmp.eq.s32.totalorder 0, 0
    // Predicated region
    $region18: #{tpu_custom_call.1} parent=1 // pred_check
      %p42 = pneg %p41
    $region19: #{tpu_custom_call.1} parent=1 // pred_check_branch
      %44 = sbr.rel (%p42) target = $region21
    $region20: #{tpu_custom_call.1} parent=1 // pred_region
      %vm45 = vcmask 261120
      %46 = vst.msk [vmem:[#allocation2] sm:$0xff] %vm45, 0.0
      %47 = vst.msk [vmem:[#allocation2 + $0x8] sm:$0xff] %vm45, 0.0
    $region21: #{tpu_custom_call.1} parent=1 // pred_fallthru
      _
    %v48 = vld [vmem:[#allocation2] sm:$0xff]
    %v49 = vld [vmem:[#allocation2 + $0x8] sm:$0xff]
    %v50 = vld [vmem:[#allocation3] sm:$0xf]
    %v51 = vld [vmem:[#allocation3 + $0x4] sm:$0xf]
    %v52 = vld [vmem:[#allocation6] sm:$0xf]
    %v53 = vld [vmem:[#allocation6 + $0x4] sm:$0xf]
    %v54 = vld [vmem:[#allocation6 + $0x8] sm:$0xf]
    %v55 = vld [vmem:[#allocation6 + $0xc] sm:$0xf]
    %v58 = vunpack.c.l.b16 %v50
    %v59 = vunpack.c.l.b16 %v51
    %v60 = vpack.c.b16 %v59, %v58
    %v65 = vunpack.c.l.b16 %v52
    %v66 = vunpack.c.l.b16 %v53
    %v67 = vunpack.c.l.b16 %v54
    %v68 = vunpack.c.l.b16 %v55
    %v69 = vpack.c.b16 %v66, %v65
    %v70 = vpack.c.b16 %v68, %v67
    %vm73 = vcmask 261120
    %v75 = vsel %vm73, %v60, 0
    %77 = vmatprep.subr.bf16.mxu0 0
    %78 = vmatpush1.bf16.msra.mxu0 %v69
    %79 = vmatprep.subr.bf16.mxu0 0
    %80 = vmatpush1.bf16.msra.mxu0 %v70
    %81 = vmatprep.subr.bf16.mxu0 0
    %82 = vmatpush1.bf16.msra.mxu0 0
    %83 = vmatprep.subr.bf16.mxu0 0
    %84 = vmatpush1.bf16.msra.mxu0 0
    %85 = vmatprep.subr.bf16.mxu0 0
    %86 = vmatpush1.bf16.msra.mxu0 0
    %87 = vmatprep.subr.bf16.mxu0 0
    %88 = vmatpush1.bf16.msra.mxu0 0
    %89 = vmatprep.subr.bf16.mxu0 0
    %90 = vmatpush1.bf16.msra.mxu0 0
    %91 = vmatprep.subr.bf16.mxu0 0
    %92 = vmatpush1.bf16.msra.mxu0 0
    %93 = vmatprep.subr.bf16.mxu0 0
    %94 = vmatpush1.bf16.msra.mxu0 0
    %95 = vmatprep.subr.bf16.mxu0 0
    %96 = vmatpush1.bf16.msra.mxu0 0
    %97 = vmatprep.subr.bf16.mxu0 0
    %98 = vmatpush1.bf16.msra.mxu0 0
    %99 = vmatprep.subr.bf16.mxu0 0
    %100 = vmatpush1.bf16.msra.mxu0 0
    %101 = vmatprep.subr.bf16.mxu0 0
    %102 = vmatpush1.bf16.msra.mxu0 0
    %103 = vmatprep.subr.bf16.mxu0 0
    %104 = vmatpush1.bf16.msra.mxu0 0
    %105 = vmatprep.subr.bf16.mxu0 0
    %106 = vmatpush1.bf16.msra.mxu0 0
    %107 = vmatprep.subr.bf16.mxu0 0
    %108 = vmatpush1.bf16.msra.mxu0 0
    %109 = vmatprep.mubr.bf16.mxu0 0
    %110 = vmatmul.mubr.bf16.gmra.mrb[0].mxu0 %v75
    %v111 = vpop.f32.mrb[0].mxu0
    %v112 = vadd.f32 0.0, %v111
    %v113 = vpop.f32.mrb[0].mxu0
    %v114 = vpop.f32.mrb[0].mxu0
    %v115 = vadd.f32 0.0, %v114
    %v116 = vpop.f32.mrb[0].mxu0
    %117 = vdwg.mxu0
    %v118 = vadd.f32 %v48, %v112
    %v119 = vadd.f32 %v49, %v115
    %120 = vst.msk [vmem:[#allocation2] sm:$0xff] %vm73, %v118
    %121 = vst.msk [vmem:[#allocation2 + $0x8] sm:$0xff] %vm73, %v119
    // Predicated region
    $region22: #{tpu_custom_call.1} parent=1 // pred_check
      %p122 = pneg %p41
    $region23: #{tpu_custom_call.1} parent=1 // pred_check_branch
      %124 = sbr.rel (%p122) target = $region25
    $region24: #{tpu_custom_call.1} parent=1 // pred_region
      %v125 = vld [vmem:[#allocation2] sm:$0xff]
      %v126 = vld [vmem:[#allocation2 + $0x8] sm:$0xff]
      %v127 = vpack.c.bf16 %v126, %v125
      %v129 = vunpack.c.l.b16 %v127
      %v130 = vunpack.c.h.b16 %v127
      %v131 = vpack.c.b16 %v129, %v129
      %v132 = vpack.c.b16 %v130, %v130
      %vm135 = vcmask 257024
      %136 = vst.msk [vmem:[#allocation8] sm:$0xf] %vm135, %v131
      %137 = vst.msk [vmem:[#allocation8 + $0x4] sm:$0xf] %vm135, %v132
    $region25: #{tpu_custom_call.1} parent=1 // pred_fallthru
      _
    // Predicated region
    $region26: #{tpu_custom_call.1} parent=1 // pred_check
      _
    $region27: #{tpu_custom_call.1} parent=1 // pred_check_branch
      %139 = sbr.rel (0) target = $region29
    $region28: #{tpu_custom_call.1} parent=1 // pred_region
      %s141 = ssub.s32 128, 128
      %142 = vsyncadd [#allocation5], %s141
      %s143 = sshll.u32 [#allocation8], 4
      %s144 = int_to_ptr.vmem [resolvable:$true] %s143
      %149 = dma.vmem_to_hbm [thread:$0]  %s144, 128, %s2, [#allocation5], 64, 64, 4
    $region29: #{tpu_custom_call.1} parent=1 // pred_fallthru
      _
    // Predicated region
    $region30: #{tpu_custom_call.1} parent=1 // pred_check
      _
    $region31: #{tpu_custom_call.1} parent=1 // pred_check_branch
      %151 = sbr.rel (0) target = $region33
    $region32: #{tpu_custom_call.1} parent=1 // pred_region
      %152 = dma.done [#allocation5], 128
    $region33: #{tpu_custom_call.1} parent=1 // pred_fallthru
      _
    %153 = vsyncpa [#allocation4], 1
    %154 = vsyncpa [#allocation7], 1
    %155 = vsyncpa [#allocation5], 1

</llo_original>
